<compile_context>
chip_gen: v7x
topology: tpu7x:2x2x1
jax: 0.10.0
libtpu: 0.0.40
codegen_flags: <defaults>
</compile_context>

<pallas_src>
import jax
import jax.numpy as jnp
from jax.experimental import pallas as pl
from jax.experimental.pallas import tpu as pltpu


def _linear_leakyrelu_kernel(x_ref, w_ref, b_ref, o_ref):
    # x_ref: (TB, D_in) bf16 (batch tile), w_ref: (D_in, D_out) bf16 (resident),
    # b_ref: (1, D_out) f32 (resident), o_ref: (TB, D_out) out_dtype
    y = jnp.dot(x_ref[...], w_ref[...], preferred_element_type=jnp.float32)
    y = y + b_ref[...]
    # LeakyReLU(negative_slope=0.3): maximum(y, 0.3*y) == where(y>=0, y, 0.3*y)
    # for slopes in (0, 1) -> one vmul + one vmax on the VPU.
    o_ref[...] = jnp.maximum(y, 0.3 * y).astype(o_ref.dtype)


def net_forward(x, w_t, b, *, tile_b=2048, out_dtype=jnp.bfloat16):
    """Forward of Net: LeakyReLU_{0.3}(x @ w_t + b).

    x:   (B, D_in)     float32
    w_t: (D_in, D_out) float32  (PyTorch weight transposed)
    b:   (D_out,)      float32
    returns (B, D_out) out_dtype (bf16 by default)
    """
    B, D_in = x.shape
    D_out = w_t.shape[1]

    # Batch tile: multiple of 8 (sublane), capped at tile_b and at the
    # rounded-up batch. No host-side batch pad -- Pallas masks the ragged
    # last block (reads padded, writes masked).
    tb = min(tile_b, max(8, ((B + 7) // 8) * 8))
    tb = ((tb + 7) // 8) * 8
    grid = (pl.cdiv(B, tb),)

    # bf16 inputs for the MXU; f32 accumulation / epilogue inside the kernel.
    x_bf = x.astype(jnp.bfloat16)
    w_bf = w_t.astype(jnp.bfloat16)
    b2 = b.reshape(1, D_out).astype(jnp.float32)

    out_bytes = jnp.dtype(out_dtype).itemsize

    # VMEM sized to the actual buffers: double-buffered x / out tiles,
    # single-buffered resident W / bias, plus headroom for internal scratch.
    vmem_bytes = (
        2 * (tb * D_in * 2)              # x tile, bf16, double-buffered
        + 2 * (tb * D_out * out_bytes)   # out tile, double-buffered
        + (D_in * D_out * 2)             # resident weight, bf16
        + (D_out * 4)                    # resident bias, f32
    )
    vmem_limit = min(2 * int(vmem_bytes) + (4 << 20), 64 << 20)

    cost = pl.CostEstimate(
        flops=int(2 * B * D_in * D_out),
        transcendentals=0,
        bytes_accessed=int(
            2 * (B * D_in + D_in * D_out)    # bf16 x and W reads
            + out_bytes * B * D_out          # output writeback (dominant)
            + 4 * D_out                      # f32 bias
        ),
    )

    return pl.pallas_call(
        _linear_leakyrelu_kernel,
        out_shape=jax.ShapeDtypeStruct((B, D_out), out_dtype),
        grid=grid,
        in_specs=[
            # x: tiled over B; full-K block (satisfies the (8,128) rule since
            # the last dim equals the full array extent).
            pl.BlockSpec((tb, D_in), lambda i: (i, 0)),
            # W: resident across the whole grid, DMA'd once -> single buffer.
            pl.BlockSpec((D_in, D_out), lambda i: (0, 0),
                         pipeline_mode=pl.Buffered(1)),
            # bias: resident, single buffer.
            pl.BlockSpec((1, D_out), lambda i: (0, 0),
                         pipeline_mode=pl.Buffered(1)),
        ],
        out_specs=pl.BlockSpec((tb, D_out), lambda i: (i, 0)),
        compiler_params=pltpu.CompilerParams(
            dimension_semantics=("parallel",),
            vmem_limit_bytes=vmem_limit,
        ),
        cost_estimate=cost,
    )(x_bf, w_bf, b2)


if __name__ == "__main__":
    # Small synthetic shapes: batch=8, in_features=32 (stand-in for
    # X_train.shape[1]), out_features=512 as specified by the module.
    B, D_IN, D_OUT = 8, 32, 512

    key = jax.random.PRNGKey(0)
    kx, kw, kb = jax.random.split(key, 3)

    x = jax.random.normal(kx, (B, D_IN), dtype=jnp.float32)
    # PyTorch stores weight as (D_out, D_in); we keep the transposed layout
    # (D_in, D_out) for the kernel.
    w_t = jax.random.normal(kw, (D_IN, D_OUT), dtype=jnp.float32) * 0.05
    b = jax.random.normal(kb, (D_OUT,), dtype=jnp.float32) * 0.05

    out = net_forward(x, w_t, b)
    out = jax.block_until_ready(out)

    # Reference in plain JAX (same semantics as torch Linear + LeakyReLU(0.3)).
    ref = x @ w_t + b[None, :]
    ref = jnp.where(ref >= 0, ref, 0.3 * ref)

    assert out.shape == (B, D_OUT)
    assert out.dtype == jnp.bfloat16
    out_f32 = out.astype(jnp.float32)
    # Tolerance loosened for bf16 matmul inputs / bf16 output (f32 accumulation).
    assert jnp.allclose(out_f32, ref, atol=2e-2, rtol=2e-2), (
        float(jnp.max(jnp.abs(out_f32 - ref)))
    )

    print("KERNEL_OK")
</pallas_src>

<mosaic_0001>
module attributes {stable_mosaic.version = 11 : i64} {
  func.func @_linear_leakyrelu_kernel(%arg0: i32, %arg1: memref<8x32xbf16, #tpu.memory_space<vmem>>, %arg2: memref<32x512xbf16, #tpu.memory_space<vmem>>, %arg3: memref<1x512xf32, #tpu.memory_space<vmem>>, %arg4: memref<8x512xbf16, #tpu.memory_space<vmem>>) attributes {dimension_semantics = [#tpu.dimension_semantics<parallel>], iteration_bounds = array<i64: 1>, scalar_prefetch = 0 : i64, scratch_operands = 0 : i64, tpu.core_type = #tpu.core_type<tc>, window_params = [{transform_indices = @transform_0, window_bounds = array<i64: 8, 32>}, {pipeline_mode = #tpu.pipeline_mode<synchronous>, transform_indices = @transform_1, window_bounds = array<i64: 32, 512>}, {pipeline_mode = #tpu.pipeline_mode<synchronous>, transform_indices = @transform_2, window_bounds = array<i64: 1, 512>}, {transform_indices = @transform_3, window_bounds = array<i64: 8, 512>}]} {
    %c0 = arith.constant 0 : index
    %c0_0 = arith.constant 0 : index
    %0 = vector.load %arg1[%c0, %c0_0] : memref<8x32xbf16, #tpu.memory_space<vmem>>, vector<8x32xbf16>
    %c0_1 = arith.constant 0 : index
    %c0_2 = arith.constant 0 : index
    %1 = vector.load %arg2[%c0_1, %c0_2] : memref<32x512xbf16, #tpu.memory_space<vmem>>, vector<32x512xbf16>
    %cst = arith.constant dense<0.000000e+00> : vector<8x512xf32>
    %2 = tpu.matmul %0, %1, %cst {dimension_numbers = #tpu.dot_dimension_numbers<[1], [0], [0], [1], [0, 0, 1, 1], [], []>} : vector<8x32xbf16>, vector<32x512xbf16>, vector<8x512xf32> -> vector<8x512xf32>
    %c0_3 = arith.constant 0 : index
    %c0_4 = arith.constant 0 : index
    %3 = vector.load %arg3[%c0_3, %c0_4] : memref<1x512xf32, #tpu.memory_space<vmem>>, vector<1x512xf32>
    %4 = vector.broadcast %3 : vector<1x512xf32> to vector<8x512xf32>
    %5 = arith.addf %2, %4 : vector<8x512xf32>
    %cst_5 = arith.constant 3.000000e-01 : f32
    %6 = vector.broadcast %cst_5 : f32 to vector<8x512xf32>
    %7 = arith.mulf %6, %5 : vector<8x512xf32>
    %8 = arith.maximumf %5, %7 : vector<8x512xf32>
    %9 = arith.truncf %8 : vector<8x512xf32> to vector<8x512xbf16>
    %c0_6 = arith.constant 0 : index
    %c0_7 = arith.constant 0 : index
    %10 = vector.load %arg4[%c0_6, %c0_7] : memref<8x512xbf16, #tpu.memory_space<vmem>>, vector<8x512xbf16>
    tpu.vector_store %arg4[%c0_6, %c0_7], %9 {strides = array<i32>} : memref<8x512xbf16, #tpu.memory_space<vmem>>, vector<8x512xbf16>,
    return
  }
  func.func @transform_0(%arg0: i32) -> (i32, i32) {
    %c0_i32 = arith.constant 0 : i32
    %c0_i32_0 = arith.constant 0 : i32
    return %arg0, %c0_i32 : i32, i32
  }
  func.func @transform_1(%arg0: i32) -> (i32, i32) {
    %c0_i32 = arith.constant 0 : i32
    %c0_i32_0 = arith.constant 0 : i32
    %c0_i32_1 = arith.constant 0 : i32
    return %c0_i32, %c0_i32_0 : i32, i32
  }
  func.func @transform_2(%arg0: i32) -> (i32, i32) {
    %c0_i32 = arith.constant 0 : i32
    %c0_i32_0 = arith.constant 0 : i32
    %c0_i32_1 = arith.constant 0 : i32
    return %c0_i32, %c0_i32_0 : i32, i32
  }
  func.func @transform_3(%arg0: i32) -> (i32, i32) {
    %c0_i32 = arith.constant 0 : i32
    %c0_i32_0 = arith.constant 0 : i32
    return %arg0, %c0_i32 : i32, i32
  }
}

</mosaic_0001>

<llo_original>
// kernel: tpu_custom_call.1
$region0: #{tpu_custom_call.1}
  #allocation0 [shape = 'u32[]', space=smem, size = 0x4, offset = 0x4, fixed_abs, tag = 'smem constant byte address 0x4 - core index']
  #allocation1 [shape = 'u32[144,128]{1,0:T(1,128)}', space=vmem, size = 0x12000, scoped, tag = 'internal scratch']
  %s0 = inlined_call_operand.hbm [shape: bf16[8,32], index: 0, kind: input, shape index: {}]
  %s1 = inlined_call_operand.hbm [shape: bf16[32,512], index: 1, kind: input, shape index: {}]
  %s2 = inlined_call_operand.vmem [shape: f32[1,512], index: 2, kind: input, shape index: {}]
  %s3 = inlined_call_operand.hbm [shape: bf16[8,512], index: 3, kind: output, shape index: {}]
  %s4 = sld [smem:[#allocation0]]
  $region30: #{tpu_custom_call.1} parent=0
    _
  %s6 = ssub.s32 1, %s4
  %s7 = scalar_select 0, %s6, %s4
  $region1: #{tpu_custom_call.1} parent=0
    #allocation2 [shape = 'u8[2048]{0}', space=vmem, size = 0x800, scoped, tag = 'input window, operand 0, single buffered']
    #allocation3 [shape = 's32[1]{0}', space=sflag, size = 0x4, scoped, tag = 'scoped memory for tpu_custom_call.1']
    #allocation4 [shape = 's32[1]{0}', space=sflag, size = 0x4, scoped, tag = 'scoped memory for tpu_custom_call.1']
    #allocation5 [shape = 'u8[32768]{0}', space=vmem, size = 0x8000, scoped, tag = 'input window, operand 1, single buffered']
    #allocation6 [shape = 's32[1]{0}', space=sflag, size = 0x4, scoped, tag = 'scoped memory for tpu_custom_call.1']
    #allocation7 [shape = 'u8[8192]{0}', space=vmem, size = 0x2000, scoped, tag = 'output window, operand 0, single buffered']
    %8 = vsyncpa [#allocation3], 0
    %9 = vsyncpa [#allocation6], 0
    %10 = vsyncpa [#allocation4], 0
    // Predicated region
    $region2: #{tpu_custom_call.1} parent=1 // pred_check
      _
    $region3: #{tpu_custom_call.1} parent=1 // pred_check_branch
      %12 = sbr.rel (0) target = $region5
    $region4: #{tpu_custom_call.1} parent=1 // pred_region
      %s14 = ssub.s32 64, 64
      %15 = vsyncadd [#allocation3], %s14
      %s17 = sshll.u32 [#allocation2], 4
      %s18 = int_to_ptr.vmem [resolvable:$true] %s17
      %20 = dma.hbm_to_vmem [thread:$0]  %s0, 64, %s18, [#allocation3]
    $region5: #{tpu_custom_call.1} parent=1 // pred_fallthru
      _
    // Predicated region
    $region6: #{tpu_custom_call.1} parent=1 // pred_check
      _
    $region7: #{tpu_custom_call.1} parent=1 // pred_check_branch
      %22 = sbr.rel (0) target = $region9
    $region8: #{tpu_custom_call.1} parent=1 // pred_region
      %s24 = ssub.s32 1024, 1024
      %25 = vsyncadd [#allocation6], %s24
      %s26 = sshll.u32 [#allocation5], 4
      %s27 = int_to_ptr.vmem [resolvable:$true] %s26
      %32 = dma.hbm_to_vmem [thread:$0]  %s1, 1024, %s27, [#allocation6], 256, 256, 16
    $region9: #{tpu_custom_call.1} parent=1 // pred_fallthru
      _
    // Predicated region
    $region10: #{tpu_custom_call.1} parent=1 // pred_check
      _
    $region11: #{tpu_custom_call.1} parent=1 // pred_check_branch
      %34 = sbr.rel (0) target = $region13
    $region12: #{tpu_custom_call.1} parent=1 // pred_region
      _
    $region13: #{tpu_custom_call.1} parent=1 // pred_fallthru
      _
    // Predicated region
    $region14: #{tpu_custom_call.1} parent=1 // pred_check
      _
    $region15: #{tpu_custom_call.1} parent=1 // pred_check_branch
      %36 = sbr.rel (0) target = $region17
    $region16: #{tpu_custom_call.1} parent=1 // pred_region
      %37 = dma.done [#allocation3], 64
    $region17: #{tpu_custom_call.1} parent=1 // pred_fallthru
      _
    // Predicated region
    $region18: #{tpu_custom_call.1} parent=1 // pred_check
      _
    $region19: #{tpu_custom_call.1} parent=1 // pred_check_branch
      %39 = sbr.rel (0) target = $region21
    $region20: #{tpu_custom_call.1} parent=1 // pred_region
      %40 = dma.done [#allocation6], 1024
    $region21: #{tpu_custom_call.1} parent=1 // pred_fallthru
      _
    %v42 = vld [vmem:[#allocation2] sm:$0xf]
    %v43 = vld [vmem:[#allocation5] sm:$0xff]
    %v44 = vld [vmem:[#allocation5 + $0x8] sm:$0xff]
    %v45 = vld [vmem:[#allocation5 + $0x10] sm:$0xff]
    %v46 = vld [vmem:[#allocation5 + $0x18] sm:$0xff]
    %v47 = vld [vmem:[#allocation5 + $0x20] sm:$0xff]
    %v48 = vld [vmem:[#allocation5 + $0x28] sm:$0xff]
    %v49 = vld [vmem:[#allocation5 + $0x30] sm:$0xff]
    %v50 = vld [vmem:[#allocation5 + $0x38] sm:$0xff]
    %v51 = vld [vmem:[%s2] sm:$0xf]
    %v53 = vlaneseq
    %v54 = vshrl.u32 %v53, 7
    %v55 = vsub.s32 0, %v54
    %v56 = vrot.slane %v51, %v55
    %v57 = vlaneseq
    %v58 = vshrl.u32 %v57, 7
    %v59 = vsub.s32 1, %v58
    %v60 = vrot.slane %v51, %v59
    %v61 = vlaneseq
    %v62 = vshrl.u32 %v61, 7
    %v63 = vsub.s32 2, %v62
    %v64 = vrot.slane %v51, %v63
    %v65 = vlaneseq
    %v66 = vshrl.u32 %v65, 7
    %v67 = vsub.s32 3, %v66
    %v68 = vrot.slane %v51, %v67
    %v81 = vunpack.c.l.b16 %v43
    %v82 = vunpack.c.h.b16 %v43
    %v83 = vunpack.c.l.b16 %v44
    %v84 = vunpack.c.h.b16 %v44
    %v85 = vunpack.c.l.b16 %v45
    %v86 = vunpack.c.h.b16 %v45
    %v87 = vunpack.c.l.b16 %v46
    %v88 = vunpack.c.h.b16 %v46
    %v89 = vunpack.c.l.b16 %v47
    %v90 = vunpack.c.h.b16 %v47
    %v91 = vunpack.c.l.b16 %v48
    %v92 = vunpack.c.h.b16 %v48
    %v93 = vunpack.c.l.b16 %v49
    %v94 = vunpack.c.h.b16 %v49
    %v95 = vunpack.c.l.b16 %v50
    %v96 = vunpack.c.h.b16 %v50
    %v97 = vpack.c.b16 %v85, %v81
    %v98 = vpack.c.b16 %v86, %v82
    %v99 = vpack.c.b16 %v87, %v83
    %v100 = vpack.c.b16 %v88, %v84
    %v101 = vpack.c.b16 %v93, %v89
    %v102 = vpack.c.b16 %v94, %v90
    %v103 = vpack.c.b16 %v95, %v91
    %v104 = vpack.c.b16 %v96, %v92
    %vm113 = vcmask 261120
    %v115 = vsel %vm113, %v42, 0
    %117 = vmatprep.subr.bf16.mxu0 %v98
    %118 = vmatpush1.bf16.msra.mxu0 %v97
    %119 = vmatprep.subr.bf16.mxu0 %v102
    %120 = vmatpush1.bf16.msra.mxu0 %v101
    %121 = vmatprep.subr.bf16.mxu0 0
    %122 = vmatpush1.bf16.msra.mxu0 0
    %123 = vmatprep.subr.bf16.mxu0 0
    %124 = vmatpush1.bf16.msra.mxu0 0
    %125 = vmatprep.subr.bf16.mxu0 0
    %126 = vmatpush1.bf16.msra.mxu0 0
    %127 = vmatprep.subr.bf16.mxu0 0
    %128 = vmatpush1.bf16.msra.mxu0 0
    %129 = vmatprep.subr.bf16.mxu0 0
    %130 = vmatpush1.bf16.msra.mxu0 0
    %131 = vmatprep.subr.bf16.mxu0 0
    %132 = vmatpush1.bf16.msra.mxu0 0
    %133 = vmatprep.subr.bf16.mxu0 0
    %134 = vmatpush1.bf16.msra.mxu0 0
    %135 = vmatprep.subr.bf16.mxu0 0
    %136 = vmatpush1.bf16.msra.mxu0 0
    %137 = vmatprep.subr.bf16.mxu0 0
    %138 = vmatpush1.bf16.msra.mxu0 0
    %139 = vmatprep.subr.bf16.mxu0 0
    %140 = vmatpush1.bf16.msra.mxu0 0
    %141 = vmatprep.subr.bf16.mxu0 0
    %142 = vmatpush1.bf16.msra.mxu0 0
    %143 = vmatprep.subr.bf16.mxu0 0
    %144 = vmatpush1.bf16.msra.mxu0 0
    %145 = vmatprep.subr.bf16.mxu0 0
    %146 = vmatpush1.bf16.msra.mxu0 0
    %147 = vmatprep.subr.bf16.mxu0 0
    %148 = vmatpush1.bf16.msra.mxu0 0
    %149 = vmatprep.mubr.bf16.mxu0 0
    %150 = vmatmul.mubr.bf16.gmra.mrb[0].mxu0 %v115
    %v151 = vpop.f32.mrb[0].mxu0
    %v152 = vadd.f32 %v56, %v151
    %v153 = vpop.f32.mrb[0].mxu0
    %v154 = vadd.f32 %v60, %v153
    %v155 = vpop.f32.mrb[0].mxu0
    %v156 = vpop.f32.mrb[0].mxu0
    %157 = vdwg.mxu0
    %158 = vmatprep.subr.bf16.mxu0 %v100
    %159 = vmatpush1.bf16.msra.mxu0 %v99
    %160 = vmatprep.subr.bf16.mxu0 %v104
    %161 = vmatpush1.bf16.msra.mxu0 %v103
    %162 = vmatprep.subr.bf16.mxu0 0
    %163 = vmatpush1.bf16.msra.mxu0 0
    %164 = vmatprep.subr.bf16.mxu0 0
    %165 = vmatpush1.bf16.msra.mxu0 0
    %166 = vmatprep.subr.bf16.mxu0 0
    %167 = vmatpush1.bf16.msra.mxu0 0
    %168 = vmatprep.subr.bf16.mxu0 0
    %169 = vmatpush1.bf16.msra.mxu0 0
    %170 = vmatprep.subr.bf16.mxu0 0
    %171 = vmatpush1.bf16.msra.mxu0 0
    %172 = vmatprep.subr.bf16.mxu0 0
    %173 = vmatpush1.bf16.msra.mxu0 0
    %174 = vmatprep.subr.bf16.mxu0 0
    %175 = vmatpush1.bf16.msra.mxu0 0
    %176 = vmatprep.subr.bf16.mxu0 0
    %177 = vmatpush1.bf16.msra.mxu0 0
    %178 = vmatprep.subr.bf16.mxu0 0
    %179 = vmatpush1.bf16.msra.mxu0 0
    %180 = vmatprep.subr.bf16.mxu0 0
    %181 = vmatpush1.bf16.msra.mxu0 0
    %182 = vmatprep.subr.bf16.mxu0 0
    %183 = vmatpush1.bf16.msra.mxu0 0
    %184 = vmatprep.subr.bf16.mxu0 0
    %185 = vmatpush1.bf16.msra.mxu0 0
    %186 = vmatprep.subr.bf16.mxu0 0
    %187 = vmatpush1.bf16.msra.mxu0 0
    %188 = vmatprep.subr.bf16.mxu0 0
    %189 = vmatpush1.bf16.msra.mxu0 0
    %190 = vmatprep.mubr.bf16.mxu0 0
    %191 = vmatmul.mubr.bf16.gmra.mrb[0].mxu0 %v115
    %v192 = vpop.f32.mrb[0].mxu0
    %v193 = vadd.f32 %v64, %v192
    %v194 = vpop.f32.mrb[0].mxu0
    %v195 = vadd.f32 %v68, %v194
    %v196 = vpop.f32.mrb[0].mxu0
    %v197 = vpop.f32.mrb[0].mxu0
    %198 = vdwg.mxu0
    %v199 = vmul.f32 %v152, 0.3
    %v200 = vmul.f32 %v154, 0.3
    %v201 = vmul.f32 %v193, 0.3
    %v202 = vmul.f32 %v195, 0.3
    %v203 = vmax.f32 %v152, %v199
    %v204 = vmax.f32 %v154, %v200
    %v205 = vmax.f32 %v193, %v201
    %v206 = vmax.f32 %v195, %v202
    %v207 = vpack.c.bf16 %v203, %v203
    %v208 = vpack.c.bf16 %v204, %v204
    %v209 = vpack.c.bf16 %v205, %v205
    %v210 = vpack.c.bf16 %v206, %v206
    %v215 = vunpack.c.l.b16 %v207
    %v216 = vunpack.c.l.b16 %v208
    %v217 = vunpack.c.l.b16 %v209
    %v218 = vunpack.c.l.b16 %v210
    %v219 = vpack.c.b16 %v216, %v215
    %v220 = vpack.c.b16 %v218, %v217
    %223 = vst [vmem:[#allocation7] sm:$0xff] %v219
    %224 = vst [vmem:[#allocation7 + $0x8] sm:$0xff] %v220
    // Predicated region
    $region22: #{tpu_custom_call.1} parent=1 // pred_check
      _
    $region23: #{tpu_custom_call.1} parent=1 // pred_check_branch
      %226 = sbr.rel (0) target = $region25
    $region24: #{tpu_custom_call.1} parent=1 // pred_region
      %s228 = ssub.s32 256, 256
      %229 = vsyncadd [#allocation4], %s228
      %s231 = sshll.u32 [#allocation7], 4
      %s232 = int_to_ptr.vmem [resolvable:$true] %s231
      %234 = dma.vmem_to_hbm [thread:$0]  %s232, 256, %s3, [#allocation4]
    $region25: #{tpu_custom_call.1} parent=1 // pred_fallthru
      _
    // Predicated region
    $region26: #{tpu_custom_call.1} parent=1 // pred_check
      _
    $region27: #{tpu_custom_call.1} parent=1 // pred_check_branch
      %236 = sbr.rel (0) target = $region29
    $region28: #{tpu_custom_call.1} parent=1 // pred_region
      %237 = dma.done [#allocation4], 256
    $region29: #{tpu_custom_call.1} parent=1 // pred_fallthru
      _
    %238 = vsyncpa [#allocation3], 1
    %239 = vsyncpa [#allocation6], 1
    %240 = vsyncpa [#allocation4], 1

</llo_original>
